<compile_context>
chip_gen: v6e
topology: v6e:2x2x1
jax: 0.10.0
libtpu: 0.0.40
codegen_flags: <defaults>
</compile_context>

<pallas_src>
import functools

import jax
import jax.numpy as jnp
from jax.experimental import pallas as pl
from jax.experimental.pallas import tpu as pltpu


def _round_up(a, b):
    return ((a + b - 1) // b) * b


def _vmem_capacity_bytes():
    try:
        info = pltpu.get_tpu_info()
        cap = getattr(info, "vmem_capacity_bytes", None)
        if cap:
            return int(cap)
    except Exception:
        pass
    return 64 << 20  # conservative default (v7x)


def _choose_tiles(R, S, itemsize, target_bytes):
    """Pick (TR, TS) so a block is ~target_bytes with full sublane packing."""
    g = max(8, 32 // itemsize)          # sublane pack: f32 -> 8, bf16 -> 16, i8 -> 32
    row_bytes = S * itemsize
    if row_bytes * g <= target_bytes:
        ts = S                          # full rows: no lane masking needed
        tr = max(g, (target_bytes // row_bytes) // g * g)
        tr = min(tr, _round_up(R, g))
        if R >= 2 * g:                  # keep >= 2 row tiles (v7x megacore)
            tr = min(tr, max(g, (R // 2) // g * g))
    else:
        tr = g
        ts = (target_bytes // (g * itemsize)) // 128 * 128
        ts = max(128, min(ts, _round_up(S, 128)))
    return tr, ts


# ---------------------------------------------------------------------------
# Fused single-pass kernel: mean -> MLP -> gate -> rescale, one batch per step.
# ---------------------------------------------------------------------------
def _fused_kernel(x_ref, w1t_ref, a_ref, w2t_ref, o_ref, *, inv_s):
    # x_ref/o_ref: (1, C, S); w1t: (C, nd); a: (1, nd); w2t: (nd, C)
    mean = jnp.sum(x_ref[...], axis=-1, dtype=jnp.float32) * inv_s        # (1, C)
    h = jnp.dot(mean, w1t_ref[...], preferred_element_type=jnp.float32)   # (1, nd)
    a = a_ref[...]
    h = jnp.where(h >= 0.0, h, a * h)                                     # PReLU
    s = jnp.dot(h, w2t_ref[...], preferred_element_type=jnp.float32)      # (1, C)
    g = jax.nn.sigmoid(s)                                                 # (1, C)
    # multiply in f32, cast once on store
    o_ref[...] = (x_ref[...].astype(jnp.float32) * g[:, :, None]).astype(o_ref.dtype)


# ---------------------------------------------------------------------------
# Pass 1: squeeze (per-row sum over the spatial axis), f32 accumulation.
# ---------------------------------------------------------------------------
def _squeeze_kernel(x_ref, sum_ref, *, inv_s, ts, s_total, needs_mask):
    # x_ref:   (TR, TS)  spatial tile of TR = (batch*channel) rows
    # sum_ref: (TR, 1)   resident f32 accumulator
    @pl.when(pl.program_id(1) == 0)
    def _init():
        sum_ref[...] = jnp.zeros_like(sum_ref)

    x = x_ref[...]
    if needs_mask:
        # Tail lanes of a partial last block are undefined on read: mask them.
        # (The mask is all-true for full tiles, so no extra conditioning.)
        col = (jax.lax.broadcasted_iota(jnp.int32, x.shape, 1)
               + pl.program_id(1) * ts)
        x = jnp.where(col < s_total, x, jnp.zeros_like(x))
    sum_ref[...] += jnp.sum(x, axis=-1, keepdims=True, dtype=jnp.float32)

    @pl.when(pl.program_id(1) == pl.num_programs(1) - 1)
    def _finalize():
        sum_ref[...] = sum_ref[...] * inv_s


# ---------------------------------------------------------------------------
# Pass 2: per-row rescale, streamed over the same (TR, TS) tiles.
# ---------------------------------------------------------------------------
def _scale_kernel(x_ref, g_ref, o_ref):
    # x_ref: (TR, TS); g_ref: (TR, 1) f32 gate; o_ref: (TR, TS)
    # multiply in f32, cast once on store (matches the f32 reference for
    # bf16/fp8 inputs; free when HBM-bound).
    o_ref[...] = (x_ref[...].astype(jnp.float32) * g_ref[...]).astype(o_ref.dtype)


def se_block(x, w1, alpha, w2, *, _force_two_pass=False, _debug_tiles=None):
    """x: (B, C, D, H, W); w1: (nd, C); alpha: (nd,); w2: (C, nd)."""
    B, C, D, H, W = x.shape
    S = D * H * W
    nd = w1.shape[0]
    itemsize = x.dtype.itemsize

    # Generation-aware budgets.
    vmem_cap = _vmem_capacity_bytes()
    small_vmem = vmem_cap < (100 << 20)           # v7x: 64 MiB; v5e/v6e: 128 MiB
    target_blk = (4 << 20) if small_vmem else (8 << 20)
    limit_cap = (48 << 20) if small_vmem else (96 << 20)

    w1t = jnp.asarray(w1, jnp.float32).T          # (C, nd)
    w2t = jnp.asarray(w2, jnp.float32).T          # (nd, C)
    a = jnp.asarray(alpha, jnp.float32).reshape(1, nd)

    # ---- fused single pass (per-batch slab resident in VMEM) ----------------
    slab_bytes = C * S * itemsize
    fused_need = 4 * slab_bytes + C * S * 4 + (2 << 20)   # 2x in + 2x out + f32 temp
    if fused_need <= limit_cap and not _force_two_pass:
        x3 = x.reshape(B, C, S)
        out = pl.pallas_call(
            functools.partial(_fused_kernel, inv_s=1.0 / float(S)),
            out_shape=jax.ShapeDtypeStruct((B, C, S), x.dtype),
            grid=(B,),
            in_specs=[pl.BlockSpec((1, C, S), lambda b: (b, 0, 0)),
                      pl.BlockSpec((C, nd), lambda b: (0, 0)),
                      pl.BlockSpec((1, nd), lambda b: (0, 0)),
                      pl.BlockSpec((nd, C), lambda b: (0, 0))],
            out_specs=pl.BlockSpec((1, C, S), lambda b: (b, 0, 0)),
            compiler_params=pltpu.CompilerParams(
                dimension_semantics=("parallel",),
                vmem_limit_bytes=int(min(limit_cap, max(fused_need, 16 << 20)))),
            cost_estimate=pl.CostEstimate(
                flops=2 * B * C * S + 4 * B * C * nd,
                transcendentals=B * C,
                bytes_accessed=2 * B * C * S * itemsize + 2 * C * nd * 4),
        )(x3, w1t, a, w2t)
        return out.reshape(B, C, D, H, W)

    # ---- two-pass streaming over a (B*C, S) view ----------------------------
    R = B * C
    x2 = x.reshape(R, S)
    if _debug_tiles is not None:
        tr, ts = _debug_tiles
    else:
        tr, ts = _choose_tiles(R, S, itemsize, target_blk)
    n_r = pl.cdiv(R, tr)
    n_s = pl.cdiv(S, ts)
    needs_mask = (S % ts) != 0
    blk_bytes = tr * ts * itemsize

    # pass 1: squeeze (global average pool)
    sq_vmem = int(min(limit_cap, max(2 * blk_bytes + (2 << 20), 8 << 20)))
    sums = pl.pallas_call(
        functools.partial(_squeeze_kernel, inv_s=1.0 / float(S), ts=ts,
                          s_total=S, needs_mask=needs_mask),
        out_shape=jax.ShapeDtypeStruct((R, 1), jnp.float32),
        grid=(n_r, n_s),
        in_specs=[pl.BlockSpec((tr, ts), lambda r, s: (r, s))],
        out_specs=pl.BlockSpec((tr, 1), lambda r, s: (r, 0)),
        compiler_params=pltpu.CompilerParams(
            dimension_semantics=("parallel", "arbitrary"),
            vmem_limit_bytes=sq_vmem),
        cost_estimate=pl.CostEstimate(
            flops=R * S, transcendentals=0,
            bytes_accessed=R * S * itemsize + R * 4),
    )(x2)

    # tiny excitation MLP in plain JAX (single-digit dims: a pallas_call would
    # only add launch overhead and an HBM round trip between the two passes).
    m = sums.reshape(B, C)
    h = jnp.dot(m, w1t)
    h = jnp.where(h >= 0.0, h, a * h)                      # PReLU
    gates = jax.nn.sigmoid(jnp.dot(h, w2t)).reshape(R, 1)  # (R, 1) f32

    # pass 2: rescale
    sc_vmem = int(min(limit_cap,
                      max(4 * blk_bytes + tr * ts * 4 + (2 << 20), 8 << 20)))
    out = pl.pallas_call(
        _scale_kernel,
        out_shape=jax.ShapeDtypeStruct((R, S), x.dtype),
        grid=(n_r, n_s),
        in_specs=[pl.BlockSpec((tr, ts), lambda r, s: (r, s)),
                  pl.BlockSpec((tr, 1), lambda r, s: (r, 0))],
        out_specs=pl.BlockSpec((tr, ts), lambda r, s: (r, s)),
        compiler_params=pltpu.CompilerParams(
            dimension_semantics=("parallel", "parallel"),
            vmem_limit_bytes=sc_vmem),
        cost_estimate=pl.CostEstimate(
            flops=R * S, transcendentals=0,
            bytes_accessed=2 * R * S * itemsize + R * 4),
    )(x2, gates)

    return out.reshape(B, C, D, H, W)


def se_block_ref(x, w1, alpha, w2):
    """Pure-JAX reference matching the PyTorch module semantics."""
    y = jnp.mean(x.astype(jnp.float32), axis=(2, 3, 4))       # (B, C)
    h = y @ w1.T                                              # (B, nd)
    h = jnp.where(h >= 0.0, h, alpha[None, :] * h)            # PReLU
    g = jax.nn.sigmoid(h @ w2.T)                              # (B, C)
    return (x.astype(jnp.float32) * g[:, :, None, None, None]).astype(x.dtype)


if __name__ == "__main__":
    # SEBlock(channel=4, reduction=16) -> num_dim = max(4, 4 // 16) = 4
    B, C, D, H, W = 2, 4, 4, 4, 4
    num_dim = max(4, C // 16)

    key = jax.random.PRNGKey(0)
    kx, k1, k2 = jax.random.split(key, 3)
    x = jax.random.normal(kx, (B, C, D, H, W), dtype=jnp.float32)

    # Deterministic synthetic parameters (shapes from the module __init__).
    w1 = jax.random.normal(k1, (num_dim, C), dtype=jnp.float32) * 0.1   # Linear(C->nd), no bias
    alpha = jnp.full((num_dim,), 0.25, dtype=jnp.float32)               # PReLU default init
    w2 = jax.random.normal(k2, (C, num_dim), dtype=jnp.float32) * 0.1   # Linear(nd->C), no bias

    ref = se_block_ref(x, w1, alpha, w2)

    # 1) fused single-pass path (the demo slab easily fits VMEM).
    out = jax.block_until_ready(se_block(x, w1, alpha, w2))
    assert out.shape == x.shape
    assert jnp.allclose(out, ref, atol=1e-4, rtol=1e-4), "fused path mismatch"

    # 2) two-pass streaming path (forced) on the same inputs.
    out2 = jax.block_until_ready(se_block(x, w1, alpha, w2, _force_two_pass=True))
    assert jnp.allclose(out2, ref, atol=1e-4, rtol=1e-4), "two-pass mismatch"

    # 3) two-pass path with a ragged last spatial tile: exercises the in-kernel
    #    tail masking and the masked partial output stores (no pad / no slice).
    D2, H2, W2 = 5, 8, 8                                   # S = 320, tiles of 128
    x3 = jax.random.normal(kx, (B, C, D2, H2, W2), dtype=jnp.float32)
    ref3 = se_block_ref(x3, w1, alpha, w2)
    out3 = jax.block_until_ready(
        se_block(x3, w1, alpha, w2, _force_two_pass=True, _debug_tiles=(8, 128)))
    assert jnp.allclose(out3, ref3, atol=1e-4, rtol=1e-4), "masked tail mismatch"

    print("KERNEL_OK")
</pallas_src>

<mosaic_0001>
module attributes {stable_mosaic.version = 11 : i64} {
  func.func @_fused_kernel(%arg0: i32, %arg1: memref<1x4x64xf32, #tpu.memory_space<vmem>>, %arg2: memref<4x4xf32, #tpu.memory_space<vmem>>, %arg3: memref<1x4xf32, #tpu.memory_space<vmem>>, %arg4: memref<4x4xf32, #tpu.memory_space<vmem>>, %arg5: memref<1x4x64xf32, #tpu.memory_space<vmem>>) attributes {dimension_semantics = [#tpu.dimension_semantics<parallel>], iteration_bounds = array<i64: 2>, scalar_prefetch = 0 : i64, scratch_operands = 0 : i64, tpu.core_type = #tpu.core_type<tc>, window_params = [{transform_indices = @transform_0, window_bounds = array<i64: 1, 4, 64>}, {pipeline_mode = #tpu.pipeline_mode<synchronous>, transform_indices = @transform_1, window_bounds = array<i64: 4, 4>}, {pipeline_mode = #tpu.pipeline_mode<synchronous>, transform_indices = @transform_2, window_bounds = array<i64: 1, 4>}, {pipeline_mode = #tpu.pipeline_mode<synchronous>, transform_indices = @transform_3, window_bounds = array<i64: 4, 4>}, {transform_indices = @transform_4, window_bounds = array<i64: 1, 4, 64>}]} {
    %c0 = arith.constant 0 : index
    %c0_0 = arith.constant 0 : index
    %c0_1 = arith.constant 0 : index
    %0 = vector.load %arg1[%c0, %c0_0, %c0_1] : memref<1x4x64xf32, #tpu.memory_space<vmem>>, vector<1x4x64xf32>
    %cst = arith.constant dense<0.000000e+00> : vector<1x4xf32>
    %1 = vector.multi_reduction <add>, %0, %cst [2] : vector<1x4x64xf32> to vector<1x4xf32>
    %cst_2 = arith.constant 1.562500e-02 : f32
    %2 = vector.broadcast %cst_2 : f32 to vector<1x4xf32>
    %3 = arith.mulf %1, %2 : vector<1x4xf32>
    %c0_3 = arith.constant 0 : index
    %c0_4 = arith.constant 0 : index
    %4 = vector.load %arg2[%c0_3, %c0_4] : memref<4x4xf32, #tpu.memory_space<vmem>>, vector<4x4xf32>
    %cst_5 = arith.constant dense<0.000000e+00> : vector<1x4xf32>
    %5 = tpu.matmul %3, %4, %cst_5 {dimension_numbers = #tpu.dot_dimension_numbers<[1], [0], [0], [1], [0, 0, 1, 1], [], []>} : vector<1x4xf32>, vector<4x4xf32>, vector<1x4xf32> -> vector<1x4xf32>
    %c0_6 = arith.constant 0 : index
    %c0_7 = arith.constant 0 : index
    %6 = vector.load %arg3[%c0_6, %c0_7] : memref<1x4xf32, #tpu.memory_space<vmem>>, vector<1x4xf32>
    %cst_8 = arith.constant 0.000000e+00 : f32
    %7 = vector.broadcast %cst_8 : f32 to vector<1x4xf32>
    %8 = arith.cmpf oge, %5, %7 : vector<1x4xf32>
    %9 = arith.mulf %6, %5 : vector<1x4xf32>
    %10 = arith.select %8, %5, %9 : vector<1x4xi1>, vector<1x4xf32>
    %c0_9 = arith.constant 0 : index
    %c0_10 = arith.constant 0 : index
    %11 = vector.load %arg4[%c0_9, %c0_10] : memref<4x4xf32, #tpu.memory_space<vmem>>, vector<4x4xf32>
    %cst_11 = arith.constant dense<0.000000e+00> : vector<1x4xf32>
    %12 = tpu.matmul %10, %11, %cst_11 {dimension_numbers = #tpu.dot_dimension_numbers<[1], [0], [0], [1], [0, 0, 1, 1], [], []>} : vector<1x4xf32>, vector<4x4xf32>, vector<1x4xf32> -> vector<1x4xf32>
    %13 = arith.negf %12 : vector<1x4xf32>
    %14 = math.exp %13 : vector<1x4xf32>
    %cst_12 = arith.constant 1.000000e+00 : f32
    %15 = vector.broadcast %cst_12 : f32 to vector<1x4xf32>
    %16 = arith.addf %15, %14 : vector<1x4xf32>
    %17 = arith.divf %15, %16 : vector<1x4xf32>
    %c0_13 = arith.constant 0 : index
    %c0_14 = arith.constant 0 : index
    %c0_15 = arith.constant 0 : index
    %18 = vector.load %arg1[%c0_13, %c0_14, %c0_15] : memref<1x4x64xf32, #tpu.memory_space<vmem>>, vector<1x4x64xf32>
    %19 = vector.shape_cast %17 : vector<1x4xf32> to vector<1x4x1xf32>
    %20 = vector.broadcast %19 : vector<1x4x1xf32> to vector<1x4x64xf32>
    %21 = arith.mulf %18, %20 : vector<1x4x64xf32>
    %c0_16 = arith.constant 0 : index
    %c0_17 = arith.constant 0 : index
    %c0_18 = arith.constant 0 : index
    %22 = vector.load %arg5[%c0_16, %c0_17, %c0_18] : memref<1x4x64xf32, #tpu.memory_space<vmem>>, vector<1x4x64xf32>
    tpu.vector_store %arg5[%c0_16, %c0_17, %c0_18], %21 {strides = array<i32>} : memref<1x4x64xf32, #tpu.memory_space<vmem>>, vector<1x4x64xf32>,
    return
  }
  func.func @transform_0(%arg0: i32) -> (i32, i32, i32) {
    %c0_i32 = arith.constant 0 : i32
    %c0_i32_0 = arith.constant 0 : i32
    %c0_i32_1 = arith.constant 0 : i32
    return %arg0, %c0_i32, %c0_i32_0 : i32, i32, i32
  }
  func.func @transform_1(%arg0: i32) -> (i32, i32) {
    %c0_i32 = arith.constant 0 : i32
    %c0_i32_0 = arith.constant 0 : i32
    %c0_i32_1 = arith.constant 0 : i32
    return %c0_i32, %c0_i32_0 : i32, i32
  }
  func.func @transform_2(%arg0: i32) -> (i32, i32) {
    %c0_i32 = arith.constant 0 : i32
    %c0_i32_0 = arith.constant 0 : i32
    %c0_i32_1 = arith.constant 0 : i32
    return %c0_i32, %c0_i32_0 : i32, i32
  }
  func.func @transform_3(%arg0: i32) -> (i32, i32) {
    %c0_i32 = arith.constant 0 : i32
    %c0_i32_0 = arith.constant 0 : i32
    %c0_i32_1 = arith.constant 0 : i32
    return %c0_i32, %c0_i32_0 : i32, i32
  }
  func.func @transform_4(%arg0: i32) -> (i32, i32, i32) {
    %c0_i32 = arith.constant 0 : i32
    %c0_i32_0 = arith.constant 0 : i32
    %c0_i32_1 = arith.constant 0 : i32
    return %arg0, %c0_i32, %c0_i32_0 : i32, i32, i32
  }
}

</mosaic_0001>

<llo_original>
// kernel: tpu_custom_call.1
$region0: #{tpu_custom_call.1}
  #allocation0 [shape = 'u32[]', space=smem, size = 0x4, offset = 0x4, fixed_abs, tag = 'smem constant byte address 0x4 - core index']
  #allocation1 [shape = 'u32[144,128]{1,0:T(1,128)}', space=vmem, size = 0x12000, scoped, tag = 'internal scratch']
  %s0 = inlined_call_operand.hbm [shape: f32[2,4,64], index: 0, kind: input, shape index: {}]
  %s1 = inlined_call_operand.hbm [shape: f32[4,4], index: 1, kind: input, shape index: {}]
  %s2 = inlined_call_operand.vmem [shape: f32[1,4], index: 2, kind: input, shape index: {}]
  %s3 = inlined_call_operand.vmem [shape: f32[4,4], index: 3, kind: input, shape index: {}]
  %s4 = inlined_call_operand.hbm [shape: f32[2,4,64], index: 4, kind: output, shape index: {}]
  %s5 = sld [smem:[#allocation0]]
  $region57: #{tpu_custom_call.1} parent=0
    _
  %s7 = ssub.s32 1, %s5
  %s8 = scalar_select 0, %s7, %s5
  $region1: #{tpu_custom_call.1} parent=0
    #allocation2 [shape = 'u8[4096]{0}', space=vmem, size = 0x1000, scoped, tag = 'input window, operand 0']
    #allocation3 [shape = 's32[2]{0}', space=sflag, size = 0x8, scoped, tag = 'scoped memory for tpu_custom_call.1']
    #allocation4 [shape = 's32[2]{0}', space=sflag, size = 0x8, scoped, tag = 'scoped memory for tpu_custom_call.1']
    #allocation5 [shape = 'u8[2048]{0}', space=vmem, size = 0x800, scoped, tag = 'input window, operand 1, single buffered']
    #allocation6 [shape = 's32[1]{0}', space=sflag, size = 0x4, scoped, tag = 'scoped memory for tpu_custom_call.1']
    #allocation7 [shape = 'u8[4096]{0}', space=vmem, size = 0x1000, scoped, tag = 'output window, operand 0']
    %9 = vsyncpa [#allocation3], 0
    %s10 = scalar_lea.sflag [#allocation3], 1
    %11 = vsyncpa %s10, 0
    %12 = vsyncpa [#allocation6], 0
    %13 = vsyncpa [#allocation4], 0
    %s14 = scalar_lea.sflag [#allocation4], 1
    %15 = vsyncpa %s14, 0
    loop: start=0, step=1, limit=4
    $region2: #{tpu_custom_call.1} parent=1 // loop_pre_header
      _
    $region3: #{tpu_custom_call.1} parent=1 // loop_header
      %s17 = sphi 0, %s21
      %p18 = scmp.ge.s32.totalorder %s17, 4
      %s27 = sphi 0, %s29
      %s30 = sphi 0, %s27
      %s31 = sphi 0, %s30
      %s47 = sphi 0, %s31
      %s51 = sphi 0, %s51
      %s53 = sphi 0, %s51
      %s54 = sphi 0, %s53
      %s68 = sphi 0, %s54
      %s72 = sphi 0, %s72
      %s74 = sphi 0, %s72
      %s75 = sphi 0, %s74
      %s89 = sphi 0, %s75
      %s93 = sphi 0, %s93
      %s95 = sphi 0, %s93
      %s96 = sphi 0, %s95
      %s110 = sphi 0, %s96
      %s116 = sphi 0, %s118
      %s119 = sphi 0, %s116
      %s120 = sphi 0, %s119
      %s136 = sphi 0, %s120
    $region4: #{tpu_custom_call.1} parent=1 // loop_header_branch
      %20 = sbr.rel (%p18) target = $region8
    $region5: #{tpu_custom_call.1} parent=1 // loop_body
      %s22 = ssub.s32 %s17, 1
      %s23 = ssub.s32 %s17, 2
      %s24 = sadd.s32 %s17, 1
      %s25 = ssub.s32 %s17, %s24
      %p26 = scmp.eq.s32.totalorder %s25, 0
      %s28 = sadd.s32 %s27, 1
      %s29 = scalar_select %p26, %s27, %s28
      %p32 = pneg %p26
      %p33 = scmp.eq.s32.totalorder %s17, 1
      %p34 = por %p32, %p33
      %p35 = scmp.ne.s32.totalorder %s27, %s30
      %p36 = scmp.eq.s32.totalorder %s17, 0
      %p37 = por %p35, %p36
      %p38 = scmp.ne.s32.totalorder %s27, %s30
      %p39 = scmp.eq.s32.totalorder %s22, 1
      %p40 = por %p38, %p39
      %p41 = scmp.ne.s32.totalorder %s30, %s31
      %p42 = scmp.eq.s32.totalorder %s22, 0
      %p43 = por %p41, %p42
      %p44 = scmp.ne.s32.totalorder %s30, %s31
      %p45 = scmp.eq.s32.totalorder %s23, 1
      %p46 = por %p44, %p45
      %p48 = scmp.ne.s32.totalorder %s31, %s47
      %p49 = scmp.eq.s32.totalorder %s23, 0
      %p50 = por %p48, %p49
      %s52 = sadd.s32 %s51, 1
      %p55 = scmp.eq.s32.totalorder %s17, 1
      %p56 = scmp.ne.s32.totalorder %s51, %s53
      %p57 = scmp.eq.s32.totalorder %s17, 0
      %p58 = por %p56, %p57
      %p59 = scmp.ne.s32.totalorder %s51, %s53
      %p60 = scmp.eq.s32.totalorder %s22, 1
      %p61 = por %p59, %p60
      %p62 = scmp.ne.s32.totalorder %s53, %s54
      %p63 = scmp.eq.s32.totalorder %s22, 0
      %p64 = por %p62, %p63
      %p65 = scmp.ne.s32.totalorder %s53, %s54
      %p66 = scmp.eq.s32.totalorder %s23, 1
      %p67 = por %p65, %p66
      %p69 = scmp.ne.s32.totalorder %s54, %s68
      %p70 = scmp.eq.s32.totalorder %s23, 0
      %p71 = por %p69, %p70
      %s73 = sadd.s32 %s72, 1
      %p76 = scmp.eq.s32.totalorder %s17, 1
      %p77 = scmp.ne.s32.totalorder %s72, %s74
      %p78 = scmp.eq.s32.totalorder %s17, 0
      %p79 = por %p77, %p78
      %p80 = scmp.ne.s32.totalorder %s72, %s74
      %p81 = scmp.eq.s32.totalorder %s22, 1
      %p82 = por %p80, %p81
      %p83 = scmp.ne.s32.totalorder %s74, %s75
      %p84 = scmp.eq.s32.totalorder %s22, 0
      %p85 = por %p83, %p84
      %p86 = scmp.ne.s32.totalorder %s74, %s75
      %p87 = scmp.eq.s32.totalorder %s23, 1
      %p88 = por %p86, %p87
      %p90 = scmp.ne.s32.totalorder %s75, %s89
      %p91 = scmp.eq.s32.totalorder %s23, 0
      %p92 = por %p90, %p91
      %s94 = sadd.s32 %s93, 1
      %p97 = scmp.eq.s32.totalorder %s17, 1
      %p98 = scmp.ne.s32.totalorder %s93, %s95
      %p99 = scmp.eq.s32.totalorder %s17, 0
      %p100 = por %p98, %p99
      %p101 = scmp.ne.s32.totalorder %s93, %s95
      %p102 = scmp.eq.s32.totalorder %s22, 1
      %p103 = por %p101, %p102
      %p104 = scmp.ne.s32.totalorder %s95, %s96
      %p105 = scmp.eq.s32.totalorder %s22, 0
      %p106 = por %p104, %p105
      %p107 = scmp.ne.s32.totalorder %s95, %s96
      %p108 = scmp.eq.s32.totalorder %s23, 1
      %p109 = por %p107, %p108
      %p111 = scmp.ne.s32.totalorder %s96, %s110
      %p112 = scmp.eq.s32.totalorder %s23, 0
      %p113 = por %p111, %p112
      %s114 = ssub.s32 %s17, %s24
      %p115 = scmp.eq.s32.totalorder %s114, 0
      %s117 = sadd.s32 %s116, 1
      %s118 = scalar_select %p115, %s116, %s117
      %p121 = pneg %p115
      %p122 = scmp.eq.s32.totalorder %s17, 1
      %p123 = por %p121, %p122
      %p124 = scmp.ne.s32.totalorder %s116, %s119
      %p125 = scmp.eq.s32.totalorder %s17, 0
      %p126 = por %p124, %p125
      %p127 = scmp.ne.s32.totalorder %s116, %s119
      %p128 = scmp.eq.s32.totalorder %s22, 1
      %p129 = por %p127, %p128
      %p130 = scmp.ne.s32.totalorder %s119, %s120
      %p131 = scmp.eq.s32.totalorder %s22, 0
      %p132 = por %p130, %p131
      %p133 = scmp.ne.s32.totalorder %s119, %s120
      %p134 = scmp.eq.s32.totalorder %s23, 1
      %p135 = por %p133, %p134
      %p137 = scmp.ne.s32.totalorder %s120, %s136
      %p138 = scmp.eq.s32.totalorder %s23, 0
      %p139 = por %p137, %p138
      %p140 = scmp.le.s32.totalorder 1, %s17
      %p141 = scmp.lt.s32.totalorder %s17, 3
      %p142 = pnand %p140, %p141
      %p143 = pneg %p142
      // Predicated region
      $region9: #{tpu_custom_call.1} parent=5 // pred_check
        _
      $region10: #{tpu_custom_call.1} parent=5 // pred_check_branch
        %145 = sbr.rel (%p142) target = $region12
      $region11: #{tpu_custom_call.1} parent=5 // pred_region
        %s146 = ssub.s32 %s17, 1
        // Predicated region
        $region13: #{tpu_custom_call.1} parent=11 // pred_check
          %p147 = pneg %p64
        $region14: #{tpu_custom_call.1} parent=11 // pred_check_branch
          %149 = sbr.rel (%p147) target = $region16
        $region15: #{tpu_custom_call.1} parent=11 // pred_region
          %s151 = ssub.s32 64, 64
          %152 = vsyncadd [#allocation6], %s151
          %s154 = sshll.u32 [#allocation5], 4
          %s155 = int_to_ptr.vmem [resolvable:$true] %s154
          %157 = dma.hbm_to_vmem [thread:$0]  %s1, 64, %s155, [#allocation6]
        $region16: #{tpu_custom_call.1} parent=11 // pred_fallthru
          _
        // Predicated region
        $region17: #{tpu_custom_call.1} parent=11 // pred_check
          %p158 = pneg %p85
        $region18: #{tpu_custom_call.1} parent=11 // pred_check_branch
          %160 = sbr.rel (%p158) target = $region20
        $region19: #{tpu_custom_call.1} parent=11 // pred_region
          _
        $region20: #{tpu_custom_call.1} parent=11 // pred_fallthru
          _
        // Predicated region
        $region21: #{tpu_custom_call.1} parent=11 // pred_check
          %p161 = pneg %p106
        $region22: #{tpu_custom_call.1} parent=11 // pred_check_branch
          %163 = sbr.rel (%p161) target = $region24
        $region23: #{tpu_custom_call.1} parent=11 // pred_region
          _
        $region24: #{tpu_custom_call.1} parent=11 // pred_fallthru
          _
      $region12: #{tpu_custom_call.1} parent=5 // pred_fallthru
        _
      %p164 = scmp.lt.s32.totalorder %s17, 2
      // Predicated region
      $region25: #{tpu_custom_call.1} parent=5 // pred_check
        %p165 = pneg %p164
      $region26: #{tpu_custom_call.1} parent=5 // pred_check_branch
        %167 = sbr.rel (%p165) target = $region28
      $region27: #{tpu_custom_call.1} parent=5 // pred_region
        // Predicated region
        $region29: #{tpu_custom_call.1} parent=27 // pred_check
          %p168 = pneg %p37
        $region30: #{tpu_custom_call.1} parent=27 // pred_check_branch
          %170 = sbr.rel (%p168) target = $region32
        $region31: #{tpu_custom_call.1} parent=27 // pred_region
          %s171 = sand.u32 %s27, 1
          %s172 = scalar_lea.sflag [#allocation3], %s171
          %s173 = sand.u32 %s27, 1
          %s174 = smul.addr %s173, 4
          %s175 = scalar_lea.vmem [#allocation2], %s174
          %s177 = ssub.s32 64, 64
          %178 = vsyncadd %s172, %s177
          %s179 = smul.addr %s17, 64
          %s180 = scalar_lea.hbm %s0, %s179
          %s182 = sshll.u32 %s175, 4
          %s183 = int_to_ptr.vmem [resolvable:$true] %s182
          %185 = dma.hbm_to_vmem [thread:$0]  %s180, 64, %s183, %s172
        $region32: #{tpu_custom_call.1} parent=27 // pred_fallthru
          _
      $region28: #{tpu_custom_call.1} parent=5 // pred_fallthru
        _
      %p186 = scmp.le.s32.totalorder 1, %s17
      %p187 = scmp.lt.s32.totalorder %s17, 3
      %p188 = pnand %p186, %p187
      %p189 = pneg %p188
      // Predicated region
      $region33: #{tpu_custom_call.1} parent=5 // pred_check
        _
      $region34: #{tpu_custom_call.1} parent=5 // pred_check_branch
        %191 = sbr.rel (%p188) target = $region36
      $region35: #{tpu_custom_call.1} parent=5 // pred_region
        %s192 = ssub.s32 %s17, 1
        %s193 = sand.u32 %s30, 1
        %s194 = scalar_lea.sflag [#allocation3], %s193
        %s195 = sand.u32 %s30, 1
        %s196 = smul.addr %s195, 4
        %s197 = scalar_lea.vmem [#allocation2], %s196
        // Predicated region
        $region37: #{tpu_custom_call.1} parent=35 // pred_check
          %p198 = pneg %p43
        $region38: #{tpu_custom_call.1} parent=35 // pred_check_branch
          %200 = sbr.rel (%p198) target = $region40
        $region39: #{tpu_custom_call.1} parent=35 // pred_region
          %201 = dma.done %s194, 64
        $region40: #{tpu_custom_call.1} parent=35 // pred_fallthru
          _
        // Predicated region
        $region41: #{tpu_custom_call.1} parent=35 // pred_check
          %p202 = pneg %p64
        $region42: #{tpu_custom_call.1} parent=35 // pred_check_branch
          %204 = sbr.rel (%p202) target = $region44
        $region43: #{tpu_custom_call.1} parent=35 // pred_region
          %205 = dma.done [#allocation6], 64
        $region44: #{tpu_custom_call.1} parent=35 // pred_fallthru
          _
        %s206 = sand.u32 %s30, 1
        %s207 = scalar_lea.sflag [#allocation3], %s206
        %s208 = sand.u32 %s30, 1
        %s209 = smul.addr %s208, 4
        %s210 = scalar_lea.vmem [#allocation2], %s209
        %p211 = pneg %p43
        %p212 = pneg %p40
        %p213 = pneg %p64
        %p214 = pneg %p61
        %p215 = pneg %p85
        %p216 = pneg %p82
        %p217 = pneg %p106
        %p218 = pneg %p103
        %p219 = pneg %p132
        %p220 = pneg %p129
        %s221 = sand.u32 %s119, 1
        %s222 = scalar_lea.sflag [#allocation4], %s221
        %s223 = sand.u32 %s119, 1
        %s224 = smul.addr %s223, 4
        %s225 = scalar_lea.vmem [#allocation7], %s224
        %v226 = vld [vmem:[%s197] sm:$0xf]
        %vm227 = vcmask 519168
        %v228 = vsel %vm227, %v226, 0.0
        %229 = vadd.xlane.f32.xlu0 %v228
        %v230 = vpop.xlane.xlu0 %229
        %v231 = vmul.f32 %v230, 0.015625
        %v232 = vld [vmem:[#allocation5] sm:$0xf]
        %v234 = vlaneseq
        %v235 = vand.u32 %v234, 127
        %v236 = vlaneseq
        %v237 = vshrl.u32 %v236, 7
        %v238 = vsub.s32 %v235, %v237
        %v239 = vrot.slane %v231, %v238
        %vm240 = vcmask 31744
        %v241 = vsel %vm240, %v239, 0
        %vm243 = vcmask 1043456
        %v245 = vsel %vm243, %v232, 0
        %247 = vmatprep.subr.mxu0 0.0
        %248 = vmatpush1.msra.mxu0 0.0
        %249 = vmatprep.subr.mxu0 0.0
        %250 = vmatpush1.msra.mxu0 0.0
        %251 = vmatprep.subr.mxu0 0.0
        %252 = vmatpush1.msra.mxu0 0.0
        %253 = vmatprep.subr.mxu0 0.0
        %254 = vmatpush1.msra.mxu0 0.0
        %255 = vmatprep.subr.mxu0 0.0
        %256 = vmatpush1.msra.mxu0 0.0
        %257 = vmatprep.subr.mxu0 0.0
        %258 = vmatpush1.msra.mxu0 0.0
        %259 = vmatprep.subr.mxu0 0.0
        %260 = vmatpush1.msra.mxu0 0.0
        %261 = vmatprep.subr.mxu0 0.0
        %262 = vmatpush1.msra.mxu0 0.0
        %263 = vmatprep.subr.mxu0 0.0
        %264 = vmatpush1.msra.mxu0 0.0
        %265 = vmatprep.subr.mxu0 0.0
        %266 = vmatpush1.msra.mxu0 0.0
        %267 = vmatprep.subr.mxu0 0.0
        %268 = vmatpush1.msra.mxu0 0.0
        %269 = vmatprep.subr.mxu0 0.0
        %270 = vmatpush1.msra.mxu0 0.0
        %271 = vmatprep.subr.mxu0 0.0
        %272 = vmatpush1.msra.mxu0 0.0
        %273 = vmatprep.subr.mxu0 0.0
        %274 = vmatpush1.msra.mxu0 0.0
        %275 = vmatprep.subr.mxu0 0.0
        %276 = vmatpush1.msra.mxu0 0.0
        %277 = vmatprep.subr.mxu0 0.0
        %278 = vmatpush1.msra.mxu0 %v245
        %279 = vmatprep.subr.mxu0 0.0
        %280 = vmatpush2.msra.mxu0 0.0
        %281 = vmatprep.subr.mxu0 0.0
        %282 = vmatpush2.msra.mxu0 0.0
        %283 = vmatprep.subr.mxu0 0.0
        %284 = vmatpush2.msra.mxu0 0.0
        %285 = vmatprep.subr.mxu0 0.0
        %286 = vmatpush2.msra.mxu0 0.0
        %287 = vmatprep.subr.mxu0 0.0
        %288 = vmatpush2.msra.mxu0 0.0
        %289 = vmatprep.subr.mxu0 0.0
        %290 = vmatpush2.msra.mxu0 0.0
        %291 = vmatprep.subr.mxu0 0.0
        %292 = vmatpush2.msra.mxu0 0.0
        %293 = vmatprep.subr.mxu0 0.0
        %294 = vmatpush2.msra.mxu0 0.0
        %295 = vmatprep.subr.mxu0 0.0
        %296 = vmatpush2.msra.mxu0 0.0
        %297 = vmatprep.subr.mxu0 0.0
        %298 = vmatpush2.msra.mxu0 0.0
        %299 = vmatprep.subr.mxu0 0.0
        %300 = vmatpush2.msra.mxu0 0.0
        %301 = vmatprep.subr.mxu0 0.0
        %302 = vmatpush2.msra.mxu0 0.0
        %303 = vmatprep.subr.mxu0 0.0
        %304 = vmatpush2.msra.mxu0 0.0
        %305 = vmatprep.subr.mxu0 0.0
        %306 = vmatpush2.msra.mxu0 0.0
        %307 = vmatprep.subr.mxu0 0.0
        %308 = vmatpush2.msra.mxu0 0.0
        %309 = vmatprep.subr.mxu0 0.0
        %310 = vmatpush2.msra.mxu0 0.0
        %311 = vmatprep.mubr.f32.mxu0 0.0
        %312 = vmatmul.mubr.f32.gmra.mxu0 %v241
        %v313 = vpop.f32.mrf.mxu0
        %v314 = vadd.f32 0.0, %v313
        %v315 = vpop.f32.mrf.mxu0
        %316 = vdwg.mxu0
        %v317 = vld [vmem:[%s2] sm:$0x1]
        %vm318 = vcmp.ge.f32.partialorder %v314, 0.0
        %v319 = vmul.f32 %v317, %v314
        %v320 = vsel %vm318, %v314, %v319
        %v321 = vld [vmem:[%s3] sm:$0xf]
        %v323 = vsel %vm240, %v320, 0
        %v326 = vsel %vm243, %v321, 0
        %328 = vmatprep.subr.mxu0 0.0
        %329 = vmatpush1.msra.mxu0 0.0
        %330 = vmatprep.subr.mxu0 0.0
        %331 = vmatpush1.msra.mxu0 0.0
        %332 = vmatprep.subr.mxu0 0.0
        %333 = vmatpush1.msra.mxu0 0.0
        %334 = vmatprep.subr.mxu0 0.0
        %335 = vmatpush1.msra.mxu0 0.0
        %336 = vmatprep.subr.mxu0 0.0
        %337 = vmatpush1.msra.mxu0 0.0
        %338 = vmatprep.subr.mxu0 0.0
        %339 = vmatpush1.msra.mxu0 0.0
        %340 = vmatprep.subr.mxu0 0.0
        %341 = vmatpush1.msra.mxu0 0.0
        %342 = vmatprep.subr.mxu0 0.0
        %343 = vmatpush1.msra.mxu0 0.0
        %344 = vmatprep.subr.mxu0 0.0
        %345 = vmatpush1.msra.mxu0 0.0
        %346 = vmatprep.subr.mxu0 0.0
        %347 = vmatpush1.msra.mxu0 0.0
        %348 = vmatprep.subr.mxu0 0.0
        %349 = vmatpush1.msra.mxu0 0.0
        %350 = vmatprep.subr.mxu0 0.0
        %351 = vmatpush1.msra.mxu0 0.0
        %352 = vmatprep.subr.mxu0 0.0
        %353 = vmatpush1.msra.mxu0 0.0
        %354 = vmatprep.subr.mxu0 0.0
        %355 = vmatpush1.msra.mxu0 0.0
        %356 = vmatprep.subr.mxu0 0.0
        %357 = vmatpush1.msra.mxu0 0.0
        %358 = vmatprep.subr.mxu0 0.0
        %359 = vmatpush1.msra.mxu0 %v326
        %360 = vmatprep.subr.mxu0 0.0
        %361 = vmatpush2.msra.mxu0 0.0
        %362 = vmatprep.subr.mxu0 0.0
        %363 = vmatpush2.msra.mxu0 0.0
        %364 = vmatprep.subr.mxu0 0.0
        %365 = vmatpush2.msra.mxu0 0.0
        %366 = vmatprep.subr.mxu0 0.0
        %367 = vmatpush2.msra.mxu0 0.0
        %368 = vmatprep.subr.mxu0 0.0
        %369 = vmatpush2.msra.mxu0 0.0
        %370 = vmatprep.subr.mxu0 0.0
        %371 = vmatpush2.msra.mxu0 0.0
        %372 = vmatprep.subr.mxu0 0.0
        %373 = vmatpush2.msra.mxu0 0.0
        %374 = vmatprep.subr.mxu0 0.0
        %375 = vmatpush2.msra.mxu0 0.0
        %376 = vmatprep.subr.mxu0 0.0
        %377 = vmatpush2.msra.mxu0 0.0
        %378 = vmatprep.subr.mxu0 0.0
        %379 = vmatpush2.msra.mxu0 0.0
        %380 = vmatprep.subr.mxu0 0.0
        %381 = vmatpush2.msra.mxu0 0.0
        %382 = vmatprep.subr.mxu0 0.0
        %383 = vmatpush2.msra.mxu0 0.0
        %384 = vmatprep.subr.mxu0 0.0
        %385 = vmatpush2.msra.mxu0 0.0
        %386 = vmatprep.subr.mxu0 0.0
        %387 = vmatpush2.msra.mxu0 0.0
        %388 = vmatprep.subr.mxu0 0.0
        %389 = vmatpush2.msra.mxu0 0.0
        %390 = vmatprep.subr.mxu0 0.0
        %391 = vmatpush2.msra.mxu0 0.0
        %392 = vmatprep.mubr.f32.mxu0 0.0
        %393 = vmatmul.mubr.f32.gmra.mxu0 %v323
        %v394 = vpop.f32.mrf.mxu0
        %v395 = vadd.f32 0.0, %v394
        %v396 = vpop.f32.mrf.mxu0
        %397 = vdwg.mxu0
        %v398 = vxor.u32 %v395, 2147483648
        %v399 = vmul.f32 %v398, 1.442695
        %v400 = vpow.pop %v399
        %v401 = vadd.f32 %v400, 1.0
        %v402 = vrcp.pop %v401
        %v403 = vmul.f32 1.0, %v402
        %v404 = vlaneseq
        %v405 = vshrl.u32 %v404, 7
        %v406 = vsub.s32 0, %v405
        %v407 = vrot.slane %v403, %v406
        %409 = vbcast.lane.b32.xlu0 %v407, 256
        %v410 = vpop.permute.xlu0 %409
        %v411 = vmul.f32 %v226, %v410
        %412 = vst.msk [vmem:[%s225] sm:$0xf] %vm227, %v411
        %s413 = sand.u32 %s119, 1
        %s414 = scalar_lea.sflag [#allocation4], %s413
        %s415 = sand.u32 %s119, 1
        %s416 = smul.addr %s415, 4
        %s417 = scalar_lea.vmem [#allocation7], %s416
        // Predicated region
        $region45: #{tpu_custom_call.1} parent=35 // pred_check
          %p418 = pneg %p129
        $region46: #{tpu_custom_call.1} parent=35 // pred_check_branch
          %420 = sbr.rel (%p418) target = $region48
        $region47: #{tpu_custom_call.1} parent=35 // pred_region
          %s422 = ssub.s32 64, 64
          %423 = vsyncadd %s414, %s422
          %s424 = smul.addr %s22, 64
          %s425 = scalar_lea.hbm %s4, %s424
          %s427 = sshll.u32 %s417, 4
          %s428 = int_to_ptr.vmem [resolvable:$true] %s427
          %430 = dma.vmem_to_hbm [thread:$0]  %s428, 64, %s425, %s414
        $region48: #{tpu_custom_call.1} parent=35 // pred_fallthru
          _
      $region36: #{tpu_custom_call.1} parent=5 // pred_fallthru
        _
      %p431 = scmp.le.s32.totalorder 2, %s17
      // Predicated region
      $region49: #{tpu_custom_call.1} parent=5 // pred_check
        %p432 = pneg %p431
      $region50: #{tpu_custom_call.1} parent=5 // pred_check_branch
        %434 = sbr.rel (%p432) target = $region52
      $region51: #{tpu_custom_call.1} parent=5 // pred_region
        %s435 = ssub.s32 %s17, 2
        // Predicated region
        $region53: #{tpu_custom_call.1} parent=51 // pred_check
          %p436 = pneg %p135
        $region54: #{tpu_custom_call.1} parent=51 // pred_check_branch
          %438 = sbr.rel (%p436) target = $region56
        $region55: #{tpu_custom_call.1} parent=51 // pred_region
          %s439 = sand.u32 %s120, 1
          %s440 = scalar_lea.sflag [#allocation4], %s439
          %s441 = sand.u32 %s120, 1
          %s442 = smul.addr %s441, 4
          %s443 = scalar_lea.vmem [#allocation7], %s442
          %444 = dma.done %s440, 64
        $region56: #{tpu_custom_call.1} parent=51 // pred_fallthru
          _
      $region52: #{tpu_custom_call.1} parent=5 // pred_fallthru
        _
    $region6: #{tpu_custom_call.1} parent=1 // loop_footer
      %s21 = sadd.s32 1, %s17
    $region7: #{tpu_custom_call.1} parent=1 // loop_footer_branch
      %16 = sbr.rel target = $region3
    $region8: #{tpu_custom_call.1} parent=1 // loop_exit
      _
    %445 = vsyncpa [#allocation3], 1
    %s446 = scalar_lea.sflag [#allocation3], 1
    %447 = vsyncpa %s446, 1
    %448 = vsyncpa [#allocation6], 1
    %449 = vsyncpa [#allocation4], 1
    %s450 = scalar_lea.sflag [#allocation4], 1
    %451 = vsyncpa %s450, 1

</llo_original>
